<compile_context>
chip_gen: v7x
topology: tpu7x:2x2x1
jax: 0.10.0
libtpu: 0.0.40
codegen_flags: <defaults>
</compile_context>

<pallas_src>
import jax
import jax.numpy as jnp
from jax.experimental import pallas as pl
from jax.experimental.pallas import tpu as pltpu

N_HOSTS = 50
N_FEATS = 3 * N_HOSTS              # 150
N_WINDOW = 3
N_LATENT = 10
N_ENC_IN = N_WINDOW * N_FEATS      # 450
N_ENC_OUT = N_HOSTS * N_LATENT     # 500
PROTO_DIM = 16                     # undefined global in the spec; chosen = n_hidden
LEAKY_SLOPE = 1.0                  # nn.LeakyReLU(True): True binds negative_slope == 1.0 (identity)

OUT_PROTO = N_HOSTS * PROTO_DIM    # 800 : sigmoid prototype outputs, host-major
OUT_REAL = OUT_PROTO + N_HOSTS     # 850 : + per-host P(class 1) of the anomaly head
OUT_PAD = 896                      # 7 * 128 -> lane-dense output slab (pad columns are zero weights)


def attention50_kernel(x_ref, w_ref, b_ref, out_ref):
    """Fused forward: one MXU matmul, one bias add, one sigmoid, one lane-dense store.

    x_ref   : (M, 450)    flattened window(s)
    w_ref   : (450, 896)  encoder folded through [prototype head | anomaly diff head | zero pad]
    b_ref   : (1, 896)
    out_ref : (M, 896)    sigmoid outputs; wrapper slices [0:800]=proto, [800:850]=P(class 1)
    """
    z = jnp.dot(x_ref[...], w_ref[...], preferred_element_type=jnp.float32) + b_ref[...]
    out_ref[...] = 1.0 / (1.0 + jnp.exp(-z))


def init_params(key):
    """Raw (un-folded) params, nn.Linear-style U(-1/sqrt(fan_in), 1/sqrt(fan_in)).

    Weights stored as (in_features, out_features), i.e. torch weight.T.
    """
    k = jax.random.split(key, 6)
    be = 1.0 / jnp.sqrt(jnp.float32(N_ENC_IN))
    bd = 1.0 / jnp.sqrt(jnp.float32(N_LATENT))
    w_enc = jax.random.uniform(k[0], (N_ENC_IN, N_ENC_OUT), jnp.float32, -be, be)
    b_enc = jax.random.uniform(k[1], (N_ENC_OUT,), jnp.float32, -be, be)
    w_anom = jax.random.uniform(k[2], (N_LATENT, 2), jnp.float32, -bd, bd)
    b_anom = jax.random.uniform(k[3], (2,), jnp.float32, -bd, bd)
    w_proto = jax.random.uniform(k[4], (N_LATENT, PROTO_DIM), jnp.float32, -bd, bd)
    b_proto = jax.random.uniform(k[5], (PROTO_DIM,), jnp.float32, -bd, bd)
    return w_enc, b_enc, w_anom, b_anom, w_proto, b_proto


def fold_params(params):
    """One-time offline param prep.

    Exact because LeakyReLU(negative_slope=1.0) is the identity, so decoder(encoder(x)) is a single
    affine map of x, and the 2-class softmax equals sigmoid of the logit difference.
    Produces a single lane-dense (450, 896) weight + (1, 896) bias:
      cols [0:800]   = encoder folded through prototype head (host-major)
      cols [800:850] = encoder folded through (anomaly logit1 - logit0)
      cols [850:896] = zero padding (sigmoid(0)=0.5, sliced off in wrapper)
    """
    w_enc, b_enc, w_anom, b_anom, w_proto, b_proto = params
    w_enc_r = w_enc.reshape(N_ENC_IN, N_HOSTS, N_LATENT)   # (450, 50, 10)
    b_enc_r = b_enc.reshape(N_HOSTS, N_LATENT)             # (50, 10)

    # Anomaly logit-difference head (class1 - class0): softmax_1 == sigmoid(l1 - l0).
    wd_dec = w_anom[:, 1] - w_anom[:, 0]                   # (10,)
    bd_dec = b_anom[1] - b_anom[0]                         # scalar
    wd = jnp.einsum('khj,j->kh', w_enc_r, wd_dec)          # (450, 50)
    bd = b_enc_r @ wd_dec + bd_dec                         # (50,)

    # Prototype head, host-major columns.
    wp = jnp.einsum('khj,jp->khp', w_enc_r, w_proto).reshape(N_ENC_IN, OUT_PROTO)   # (450, 800)
    bp = (b_enc_r @ w_proto + b_proto).reshape(OUT_PROTO)                           # (800,)

    W = jnp.zeros((N_ENC_IN, OUT_PAD), jnp.float32)
    W = W.at[:, :OUT_PROTO].set(wp).at[:, OUT_PROTO:OUT_REAL].set(wd)
    b = jnp.zeros((1, OUT_PAD), jnp.float32)
    b = b.at[0, :OUT_PROTO].set(bp).at[0, OUT_PROTO:OUT_REAL].set(bd)
    return W, b


def _run_pallas(x, W, b, *, block_m=256):
    """Run the fused kernel. Gridless & fully VMEM-resident for small M; row-blocked 'parallel'
    grid for large M (engages both TensorCores on v7x, amortizes weight DMA everywhere)."""
    M = x.shape[0]
    out_shape = jax.ShapeDtypeStruct((M, OUT_PAD), jnp.float32)
    if M >= 2 * block_m and M % block_m == 0:
        return pl.pallas_call(
            attention50_kernel,
            out_shape=out_shape,
            grid=(M // block_m,),
            in_specs=[pl.BlockSpec((block_m, N_ENC_IN), lambda i: (i, 0)),
                      pl.BlockSpec((N_ENC_IN, OUT_PAD), lambda i: (0, 0)),
                      pl.BlockSpec((1, OUT_PAD), lambda i: (0, 0))],
            out_specs=pl.BlockSpec((block_m, OUT_PAD), lambda i: (i, 0)),
            compiler_params=pltpu.CompilerParams(dimension_semantics=("parallel",)),
        )(x, W, b)
    vmem = pl.BlockSpec(memory_space=pltpu.MemorySpace.VMEM)
    return pl.pallas_call(
        attention50_kernel,
        out_shape=out_shape,
        in_specs=[vmem, vmem, vmem],
        out_specs=vmem,
    )(x, W, b)


def _split_outputs(out):
    """Slice the lane-dense slab into (anomaly_scores, prototypes)."""
    proto = out[:, :OUT_PROTO].reshape(-1, N_HOSTS, PROTO_DIM)       # (M, 50, PROTO_DIM)
    p1 = out[:, OUT_PROTO:OUT_REAL]                                  # (M, 50)  P(class 1)
    anomaly = jnp.stack([1.0 - p1, p1], axis=-1)                     # (M, 50, 2)
    return anomaly, proto


def attention50_forward_batched(x_batch, folded):
    """Batched forward: x_batch is (M, 450) of flattened windows against the same weights."""
    W, b = folded
    out = _run_pallas(x_batch.astype(jnp.float32), W, b)
    return _split_outputs(out)


def attention50_forward(t, s, folded):
    """Single-window forward matching the PyTorch module. `s` is accepted but unused (as in torch)."""
    del s
    x = t.reshape(1, N_ENC_IN).astype(jnp.float32)                   # t.view(-1)
    anomaly, proto = attention50_forward_batched(x, folded)
    return anomaly[0], proto[0]                                      # (50, 2), (50, PROTO_DIM)


def reference_forward(t, s, params):
    """Pure-JAX reference mirroring the PyTorch module (un-folded)."""
    del s
    w_enc, b_enc, w_anom, b_anom, w_proto, b_proto = params
    x = t.reshape(-1).astype(jnp.float32)
    z = x @ w_enc + b_enc
    z = jnp.where(z >= 0.0, z, LEAKY_SLOPE * z)            # LeakyReLU(negative_slope=1.0)
    zz = z.reshape(N_HOSTS, N_LATENT)
    logits = zz @ w_anom + b_anom
    anomaly = jax.nn.softmax(logits, axis=-1)              # Softmax(dim=0) on each 1-D (2,) elem
    proto = jax.nn.sigmoid(zz @ w_proto + b_proto)
    return anomaly, proto


if __name__ == "__main__":
    key = jax.random.PRNGKey(0)
    k_t, k_s, k_p, k_b = jax.random.split(key, 4)

    params = init_params(k_p)
    folded = fold_params(params)                                   # one-time offline param prep

    # --- Single-window forward (exact module semantics) ---
    t = jax.random.normal(k_t, (N_WINDOW, N_FEATS), jnp.float32)   # t.view(-1) has 450 elements
    s = jax.random.normal(k_s, (N_HOSTS, N_HOSTS), jnp.float32)    # unused by forward (as in the module)
    anomaly_scores, prototypes = attention50_forward(t, s, folded)
    jax.block_until_ready((anomaly_scores, prototypes))

    ref_anom, ref_proto = reference_forward(t, s, params)
    assert anomaly_scores.shape == (N_HOSTS, 2)
    assert prototypes.shape == (N_HOSTS, PROTO_DIM)
    assert jnp.allclose(anomaly_scores, ref_anom, atol=1e-4, rtol=1e-4)
    assert jnp.allclose(prototypes, ref_proto, atol=1e-4, rtol=1e-4)
    assert jnp.allclose(jnp.sum(anomaly_scores, axis=-1), 1.0, atol=1e-5)

    # --- Batched forward (amortizes weight DMA / launch; exercises the 'parallel' grid path) ---
    M = 512
    xb = jax.random.normal(k_b, (M, N_ENC_IN), jnp.float32)
    anom_b, proto_b = attention50_forward_batched(xb, folded)
    jax.block_until_ready((anom_b, proto_b))
    ref_ab, ref_pb = jax.vmap(lambda xr: reference_forward(xr, None, params))(xb)
    assert anom_b.shape == (M, N_HOSTS, 2)
    assert proto_b.shape == (M, N_HOSTS, PROTO_DIM)
    assert jnp.allclose(anom_b, ref_ab, atol=1e-4, rtol=1e-4)
    assert jnp.allclose(proto_b, ref_pb, atol=1e-4, rtol=1e-4)

    print("KERNEL_OK")
</pallas_src>

<mosaic_0001>
module attributes {stable_mosaic.version = 11 : i64} {
  func.func @attention50_kernel(%arg0: memref<1x450xf32, #tpu.memory_space<vmem>>, %arg1: memref<450x896xf32, #tpu.memory_space<vmem>>, %arg2: memref<1x896xf32, #tpu.memory_space<vmem>>, %arg3: memref<1x896xf32, #tpu.memory_space<vmem>>) attributes {dimension_semantics = [], scalar_prefetch = 0 : i64, scratch_operands = 0 : i64, tpu.core_type = #tpu.core_type<tc>} {
    %c0 = arith.constant 0 : index
    %c0_0 = arith.constant 0 : index
    %0 = vector.load %arg0[%c0, %c0_0] : memref<1x450xf32, #tpu.memory_space<vmem>>, vector<1x450xf32>
    %c0_1 = arith.constant 0 : index
    %c0_2 = arith.constant 0 : index
    %1 = vector.load %arg1[%c0_1, %c0_2] : memref<450x896xf32, #tpu.memory_space<vmem>>, vector<450x896xf32>
    %cst = arith.constant dense<0.000000e+00> : vector<1x896xf32>
    %2 = tpu.matmul %0, %1, %cst {dimension_numbers = #tpu.dot_dimension_numbers<[1], [0], [0], [1], [0, 0, 1, 1], [], []>} : vector<1x450xf32>, vector<450x896xf32>, vector<1x896xf32> -> vector<1x896xf32>
    %c0_3 = arith.constant 0 : index
    %c0_4 = arith.constant 0 : index
    %3 = vector.load %arg2[%c0_3, %c0_4] : memref<1x896xf32, #tpu.memory_space<vmem>>, vector<1x896xf32>
    %4 = arith.addf %2, %3 : vector<1x896xf32>
    %cst_5 = arith.constant 0.000000e+00 : f32
    %5 = vector.broadcast %cst_5 : f32 to vector<1x896xf32>
    %6 = arith.subf %5, %4 : vector<1x896xf32>
    %7 = math.exp %6 : vector<1x896xf32>
    %cst_6 = arith.constant 1.000000e+00 : f32
    %8 = vector.broadcast %cst_6 : f32 to vector<1x896xf32>
    %9 = arith.addf %8, %7 : vector<1x896xf32>
    %cst_7 = arith.constant 1.000000e+00 : f32
    %10 = vector.broadcast %cst_7 : f32 to vector<1x896xf32>
    %11 = arith.divf %10, %9 : vector<1x896xf32>
    %c0_8 = arith.constant 0 : index
    %c0_9 = arith.constant 0 : index
    %12 = vector.load %arg3[%c0_8, %c0_9] : memref<1x896xf32, #tpu.memory_space<vmem>>, vector<1x896xf32>
    tpu.vector_store %arg3[%c0_8, %c0_9], %11 {strides = array<i32>} : memref<1x896xf32, #tpu.memory_space<vmem>>, vector<1x896xf32>,
    return
  }
}

</mosaic_0001>

<llo_original>
// kernel: tpu_custom_call.1
$region0: #{tpu_custom_call.1}
  #allocation0 [shape = 'u32[]', space=smem, size = 0x4, offset = 0x4, fixed_abs, tag = 'smem constant byte address 0x4 - core index']
  #allocation1 [shape = 'u32[144,128]{1,0:T(1,128)}', space=vmem, size = 0x12000, scoped, tag = 'internal scratch']
  %s0 = inlined_call_operand.hbm [shape: f32[1,450], index: 0, kind: input, shape index: {}]
  %s1 = inlined_call_operand.hbm [shape: f32[450,896], index: 1, kind: input, shape index: {}]
  %s2 = inlined_call_operand.hbm [shape: f32[1,896], index: 2, kind: input, shape index: {}]
  %s3 = inlined_call_operand.hbm [shape: f32[1,896], index: 3, kind: output, shape index: {}]
  %s4 = sld [smem:[#allocation0]]
  $region34: #{tpu_custom_call.1} parent=0
    _
  %s6 = ssub.s32 1, %s4
  %s7 = scalar_select 0, %s6, %s4
  $region1: #{tpu_custom_call.1} parent=0
    #allocation2 [shape = 'u8[2048]{0}', space=vmem, size = 0x800, scoped, tag = 'input window, operand 0, single buffered']
    #allocation3 [shape = 's32[1]{0}', space=sflag, size = 0x4, scoped, tag = 'scoped memory for tpu_custom_call.1']
    #allocation4 [shape = 's32[1]{0}', space=sflag, size = 0x4, scoped, tag = 'scoped memory for tpu_custom_call.1']
    #allocation5 [shape = 'u8[1634304]{0}', space=vmem, size = 0x18f000, scoped, tag = 'input window, operand 1, single buffered']
    #allocation6 [shape = 's32[1]{0}', space=sflag, size = 0x4, scoped, tag = 'scoped memory for tpu_custom_call.1']
    #allocation7 [shape = 'u8[3584]{0}', space=vmem, size = 0x1000, scoped, tag = 'input window, operand 2, single buffered']
    #allocation8 [shape = 'u8[3584]{0}', space=vmem, size = 0x1000, scoped, tag = 'output window, operand 0, single buffered']
    %8 = vsyncpa [#allocation3], 0
    %9 = vsyncpa [#allocation6], 0
    %10 = vsyncpa [#allocation4], 0
    // Predicated region
    $region2: #{tpu_custom_call.1} parent=1 // pred_check
      _
    $region3: #{tpu_custom_call.1} parent=1 // pred_check_branch
      %12 = sbr.rel (0) target = $region5
    $region4: #{tpu_custom_call.1} parent=1 // pred_region
      %s14 = ssub.s32 64, 64
      %15 = vsyncadd [#allocation3], %s14
      %s17 = sshll.u32 [#allocation2], 4
      %s18 = int_to_ptr.vmem [resolvable:$true] %s17
      %20 = dma.hbm_to_vmem [thread:$0]  %s0, 64, %s18, [#allocation3]
    $region5: #{tpu_custom_call.1} parent=1 // pred_fallthru
      _
    // Predicated region
    $region6: #{tpu_custom_call.1} parent=1 // pred_check
      _
    $region7: #{tpu_custom_call.1} parent=1 // pred_check_branch
      %22 = sbr.rel (0) target = $region9
    $region8: #{tpu_custom_call.1} parent=1 // pred_region
      %s24 = ssub.s32 51072, 51072
      %25 = vsyncadd [#allocation6], %s24
      %s26 = sshll.u32 [#allocation5], 4
      %s27 = int_to_ptr.vmem [resolvable:$true] %s26
      %32 = dma.hbm_to_vmem [thread:$0]  %s1, 51072, %s27, [#allocation6], 896, 896, 56
    $region9: #{tpu_custom_call.1} parent=1 // pred_fallthru
      _
    // Predicated region
    $region10: #{tpu_custom_call.1} parent=1 // pred_check
      _
    $region11: #{tpu_custom_call.1} parent=1 // pred_check_branch
      %34 = sbr.rel (0) target = $region13
    $region12: #{tpu_custom_call.1} parent=1 // pred_region
      %s36 = ssub.s32 112, 112
      %37 = vsyncadd [#allocation6], %s36
      %s39 = sshll.u32 [#allocation7], 4
      %s40 = int_to_ptr.vmem [resolvable:$true] %s39
      %42 = dma.hbm_to_vmem [thread:$0]  %s2, 112, %s40, [#allocation6]
    $region13: #{tpu_custom_call.1} parent=1 // pred_fallthru
      _
    // Predicated region
    $region14: #{tpu_custom_call.1} parent=1 // pred_check
      _
    $region15: #{tpu_custom_call.1} parent=1 // pred_check_branch
      %44 = sbr.rel (0) target = $region17
    $region16: #{tpu_custom_call.1} parent=1 // pred_region
      %45 = dma.done [#allocation3], 64
    $region17: #{tpu_custom_call.1} parent=1 // pred_fallthru
      _
    // Predicated region
    $region18: #{tpu_custom_call.1} parent=1 // pred_check
      _
    $region19: #{tpu_custom_call.1} parent=1 // pred_check_branch
      %47 = sbr.rel (0) target = $region21
    $region20: #{tpu_custom_call.1} parent=1 // pred_region
      %48 = dma.done [#allocation6], 51072
    $region21: #{tpu_custom_call.1} parent=1 // pred_fallthru
      _
    // Predicated region
    $region22: #{tpu_custom_call.1} parent=1 // pred_check
      _
    $region23: #{tpu_custom_call.1} parent=1 // pred_check_branch
      %50 = sbr.rel (0) target = $region25
    $region24: #{tpu_custom_call.1} parent=1 // pred_region
      %51 = dma.done [#allocation6], 112
    $region25: #{tpu_custom_call.1} parent=1 // pred_fallthru
      _
    %v52 = vld [vmem:[#allocation2] sm:$0xf]
    %v53 = vld [vmem:[#allocation5] sm:$0xff]
    %v54 = vld [vmem:[#allocation5 + $0x8] sm:$0xff]
    %v55 = vld [vmem:[#allocation5 + $0x10] sm:$0xff]
    %v56 = vld [vmem:[#allocation5 + $0x18] sm:$0xff]
    %v57 = vld [vmem:[#allocation5 + $0x20] sm:$0xff]
    %v58 = vld [vmem:[#allocation5 + $0x28] sm:$0xff]
    %v59 = vld [vmem:[#allocation5 + $0x30] sm:$0xff]
    %v60 = vld [vmem:[#allocation5 + $0x38] sm:$0xff]
    %v61 = vld [vmem:[#allocation5 + $0x40] sm:$0xff]
    %v62 = vld [vmem:[#allocation5 + $0x48] sm:$0xff]
    %v63 = vld [vmem:[#allocation5 + $0x50] sm:$0xff]
    %v64 = vld [vmem:[#allocation5 + $0x58] sm:$0xff]
    %v65 = vld [vmem:[#allocation5 + $0x60] sm:$0xff]
    %v66 = vld [vmem:[#allocation5 + $0x68] sm:$0xff]
    %v67 = vld [vmem:[#allocation5 + $0x70] sm:$0xff]
    %v68 = vld [vmem:[#allocation5 + $0x78] sm:$0xff]
    %v69 = vld [vmem:[#allocation5 + $0x80] sm:$0xff]
    %v70 = vld [vmem:[#allocation5 + $0x88] sm:$0xff]
    %v71 = vld [vmem:[#allocation5 + $0x90] sm:$0xff]
    %v72 = vld [vmem:[#allocation5 + $0x98] sm:$0xff]
    %v73 = vld [vmem:[#allocation5 + $0xa0] sm:$0xff]
    %v74 = vld [vmem:[#allocation5 + $0xa8] sm:$0xff]
    %v75 = vld [vmem:[#allocation5 + $0xb0] sm:$0xff]
    %v76 = vld [vmem:[#allocation5 + $0xb8] sm:$0xff]
    %v77 = vld [vmem:[#allocation5 + $0xc0] sm:$0xff]
    %v78 = vld [vmem:[#allocation5 + $0xc8] sm:$0xff]
    %v79 = vld [vmem:[#allocation5 + $0xd0] sm:$0xff]
    %v80 = vld [vmem:[#allocation5 + $0xd8] sm:$0xff]
    %v81 = vld [vmem:[#allocation5 + $0xe0] sm:$0xff]
    %v82 = vld [vmem:[#allocation5 + $0xe8] sm:$0xff]
    %v83 = vld [vmem:[#allocation5 + $0xf0] sm:$0xff]
    %v84 = vld [vmem:[#allocation5 + $0xf8] sm:$0xff]
    %v85 = vld [vmem:[#allocation5 + $0x100] sm:$0xff]
    %v86 = vld [vmem:[#allocation5 + $0x108] sm:$0xff]
    %v87 = vld [vmem:[#allocation5 + $0x110] sm:$0xff]
    %v88 = vld [vmem:[#allocation5 + $0x118] sm:$0xff]
    %v89 = vld [vmem:[#allocation5 + $0x120] sm:$0xff]
    %v90 = vld [vmem:[#allocation5 + $0x128] sm:$0xff]
    %v91 = vld [vmem:[#allocation5 + $0x130] sm:$0xff]
    %v92 = vld [vmem:[#allocation5 + $0x138] sm:$0xff]
    %v93 = vld [vmem:[#allocation5 + $0x140] sm:$0xff]
    %v94 = vld [vmem:[#allocation5 + $0x148] sm:$0xff]
    %v95 = vld [vmem:[#allocation5 + $0x150] sm:$0xff]
    %v96 = vld [vmem:[#allocation5 + $0x158] sm:$0xff]
    %v97 = vld [vmem:[#allocation5 + $0x160] sm:$0xff]
    %v98 = vld [vmem:[#allocation5 + $0x168] sm:$0xff]
    %v99 = vld [vmem:[#allocation5 + $0x170] sm:$0xff]
    %v100 = vld [vmem:[#allocation5 + $0x178] sm:$0xff]
    %v101 = vld [vmem:[#allocation5 + $0x180] sm:$0xff]
    %v102 = vld [vmem:[#allocation5 + $0x188] sm:$0xff]
    %v103 = vld [vmem:[#allocation5 + $0x190] sm:$0xff]
    %v104 = vld [vmem:[#allocation5 + $0x198] sm:$0xff]
    %v105 = vld [vmem:[#allocation5 + $0x1a0] sm:$0xff]
    %v106 = vld [vmem:[#allocation5 + $0x1a8] sm:$0xff]
    %v107 = vld [vmem:[#allocation5 + $0x1b0] sm:$0xff]
    %v108 = vld [vmem:[#allocation5 + $0x1b8] sm:$0xff]
    %v109 = vld [vmem:[#allocation5 + $0x1c0] sm:$0xff]
    %v110 = vld [vmem:[#allocation5 + $0x1c8] sm:$0xff]
    %v111 = vld [vmem:[#allocation5 + $0x1d0] sm:$0xff]
    %v112 = vld [vmem:[#allocation5 + $0x1d8] sm:$0xff]
    %v113 = vld [vmem:[#allocation5 + $0x1e0] sm:$0xff]
    %v114 = vld [vmem:[#allocation5 + $0x1e8] sm:$0xff]
    %v115 = vld [vmem:[#allocation5 + $0x1f0] sm:$0xff]
    %v116 = vld [vmem:[#allocation5 + $0x1f8] sm:$0xff]
    %v117 = vld [vmem:[#allocation5 + $0x200] sm:$0xff]
    %v118 = vld [vmem:[#allocation5 + $0x208] sm:$0xff]
    %v119 = vld [vmem:[#allocation5 + $0x210] sm:$0xff]
    %v120 = vld [vmem:[#allocation5 + $0x218] sm:$0xff]
    %v121 = vld [vmem:[#allocation5 + $0x220] sm:$0xff]
    %v122 = vld [vmem:[#allocation5 + $0x228] sm:$0xff]
    %v123 = vld [vmem:[#allocation5 + $0x230] sm:$0xff]
    %v124 = vld [vmem:[#allocation5 + $0x238] sm:$0xff]
    %v125 = vld [vmem:[#allocation5 + $0x240] sm:$0xff]
    %v126 = vld [vmem:[#allocation5 + $0x248] sm:$0xff]
    %v127 = vld [vmem:[#allocation5 + $0x250] sm:$0xff]
    %v128 = vld [vmem:[#allocation5 + $0x258] sm:$0xff]
    %v129 = vld [vmem:[#allocation5 + $0x260] sm:$0xff]
    %v130 = vld [vmem:[#allocation5 + $0x268] sm:$0xff]
    %v131 = vld [vmem:[#allocation5 + $0x270] sm:$0xff]
    %v132 = vld [vmem:[#allocation5 + $0x278] sm:$0xff]
    %v133 = vld [vmem:[#allocation5 + $0x280] sm:$0xff]
    %v134 = vld [vmem:[#allocation5 + $0x288] sm:$0xff]
    %v135 = vld [vmem:[#allocation5 + $0x290] sm:$0xff]
    %v136 = vld [vmem:[#allocation5 + $0x298] sm:$0xff]
    %v137 = vld [vmem:[#allocation5 + $0x2a0] sm:$0xff]
    %v138 = vld [vmem:[#allocation5 + $0x2a8] sm:$0xff]
    %v139 = vld [vmem:[#allocation5 + $0x2b0] sm:$0xff]
    %v140 = vld [vmem:[#allocation5 + $0x2b8] sm:$0xff]
    %v141 = vld [vmem:[#allocation5 + $0x2c0] sm:$0xff]
    %v142 = vld [vmem:[#allocation5 + $0x2c8] sm:$0xff]
    %v143 = vld [vmem:[#allocation5 + $0x2d0] sm:$0xff]
    %v144 = vld [vmem:[#allocation5 + $0x2d8] sm:$0xff]
    %v145 = vld [vmem:[#allocation5 + $0x2e0] sm:$0xff]
    %v146 = vld [vmem:[#allocation5 + $0x2e8] sm:$0xff]
    %v147 = vld [vmem:[#allocation5 + $0x2f0] sm:$0xff]
    %v148 = vld [vmem:[#allocation5 + $0x2f8] sm:$0xff]
    %v149 = vld [vmem:[#allocation5 + $0x300] sm:$0xff]
    %v150 = vld [vmem:[#allocation5 + $0x308] sm:$0xff]
    %v151 = vld [vmem:[#allocation5 + $0x310] sm:$0xff]
    %v152 = vld [vmem:[#allocation5 + $0x318] sm:$0xff]
    %v153 = vld [vmem:[#allocation5 + $0x320] sm:$0xff]
    %v154 = vld [vmem:[#allocation5 + $0x328] sm:$0xff]
    %v155 = vld [vmem:[#allocation5 + $0x330] sm:$0xff]
    %v156 = vld [vmem:[#allocation5 + $0x338] sm:$0xff]
    %v157 = vld [vmem:[#allocation5 + $0x340] sm:$0xff]
    %v158 = vld [vmem:[#allocation5 + $0x348] sm:$0xff]
    %v159 = vld [vmem:[#allocation5 + $0x350] sm:$0xff]
    %v160 = vld [vmem:[#allocation5 + $0x358] sm:$0xff]
    %v161 = vld [vmem:[#allocation5 + $0x360] sm:$0xff]
    %v162 = vld [vmem:[#allocation5 + $0x368] sm:$0xff]
    %v163 = vld [vmem:[#allocation5 + $0x370] sm:$0xff]
    %v164 = vld [vmem:[#allocation5 + $0x378] sm:$0xff]
    %v165 = vld [vmem:[#allocation5 + $0x380] sm:$0xff]
    %v166 = vld [vmem:[#allocation5 + $0x388] sm:$0xff]
    %v167 = vld [vmem:[#allocation5 + $0x390] sm:$0xff]
    %v168 = vld [vmem:[#allocation5 + $0x398] sm:$0xff]
    %v169 = vld [vmem:[#allocation5 + $0x3a0] sm:$0xff]
    %v170 = vld [vmem:[#allocation5 + $0x3a8] sm:$0xff]
    %v171 = vld [vmem:[#allocation5 + $0x3b0] sm:$0xff]
    %v172 = vld [vmem:[#allocation5 + $0x3b8] sm:$0xff]
    %v173 = vld [vmem:[#allocation5 + $0x3c0] sm:$0xff]
    %v174 = vld [vmem:[#allocation5 + $0x3c8] sm:$0xff]
    %v175 = vld [vmem:[#allocation5 + $0x3d0] sm:$0xff]
    %v176 = vld [vmem:[#allocation5 + $0x3d8] sm:$0xff]
    %v177 = vld [vmem:[#allocation5 + $0x3e0] sm:$0xff]
    %v178 = vld [vmem:[#allocation5 + $0x3e8] sm:$0xff]
    %v179 = vld [vmem:[#allocation5 + $0x3f0] sm:$0xff]
    %v180 = vld [vmem:[#allocation5 + $0x3f8] sm:$0xff]
    %v181 = vld [vmem:[#allocation5 + $0x400] sm:$0xff]
    %v182 = vld [vmem:[#allocation5 + $0x408] sm:$0xff]
    %v183 = vld [vmem:[#allocation5 + $0x410] sm:$0xff]
    %v184 = vld [vmem:[#allocation5 + $0x418] sm:$0xff]
    %v185 = vld [vmem:[#allocation5 + $0x420] sm:$0xff]
    %v186 = vld [vmem:[#allocation5 + $0x428] sm:$0xff]
    %v187 = vld [vmem:[#allocation5 + $0x430] sm:$0xff]
    %v188 = vld [vmem:[#allocation5 + $0x438] sm:$0xff]
    %v189 = vld [vmem:[#allocation5 + $0x440] sm:$0xff]
    %v190 = vld [vmem:[#allocation5 + $0x448] sm:$0xff]
    %v191 = vld [vmem:[#allocation5 + $0x450] sm:$0xff]
    %v192 = vld [vmem:[#allocation5 + $0x458] sm:$0xff]
    %v193 = vld [vmem:[#allocation5 + $0x460] sm:$0xff]
    %v194 = vld [vmem:[#allocation5 + $0x468] sm:$0xff]
    %v195 = vld [vmem:[#allocation5 + $0x470] sm:$0xff]
    %v196 = vld [vmem:[#allocation5 + $0x478] sm:$0xff]
    %v197 = vld [vmem:[#allocation5 + $0x480] sm:$0xff]
    %v198 = vld [vmem:[#allocation5 + $0x488] sm:$0xff]
    %v199 = vld [vmem:[#allocation5 + $0x490] sm:$0xff]
    %v200 = vld [vmem:[#allocation5 + $0x498] sm:$0xff]
    %v201 = vld [vmem:[#allocation5 + $0x4a0] sm:$0xff]
    %v202 = vld [vmem:[#allocation5 + $0x4a8] sm:$0xff]
    %v203 = vld [vmem:[#allocation5 + $0x4b0] sm:$0xff]
    %v204 = vld [vmem:[#allocation5 + $0x4b8] sm:$0xff]
    %v205 = vld [vmem:[#allocation5 + $0x4c0] sm:$0xff]
    %v206 = vld [vmem:[#allocation5 + $0x4c8] sm:$0xff]
    %v207 = vld [vmem:[#allocation5 + $0x4d0] sm:$0xff]
    %v208 = vld [vmem:[#allocation5 + $0x4d8] sm:$0xff]
    %v209 = vld [vmem:[#allocation5 + $0x4e0] sm:$0xff]
    %v210 = vld [vmem:[#allocation5 + $0x4e8] sm:$0xff]
    %v211 = vld [vmem:[#allocation5 + $0x4f0] sm:$0xff]
    %v212 = vld [vmem:[#allocation5 + $0x4f8] sm:$0xff]
    %v213 = vld [vmem:[#allocation5 + $0x500] sm:$0xff]
    %v214 = vld [vmem:[#allocation5 + $0x508] sm:$0xff]
    %v215 = vld [vmem:[#allocation5 + $0x510] sm:$0xff]
    %v216 = vld [vmem:[#allocation5 + $0x518] sm:$0xff]
    %v217 = vld [vmem:[#allocation5 + $0x520] sm:$0xff]
    %v218 = vld [vmem:[#allocation5 + $0x528] sm:$0xff]
    %v219 = vld [vmem:[#allocation5 + $0x530] sm:$0xff]
    %v220 = vld [vmem:[#allocation5 + $0x538] sm:$0xff]
    %v221 = vld [vmem:[#allocation5 + $0x540] sm:$0xff]
    %v222 = vld [vmem:[#allocation5 + $0x548] sm:$0xff]
    %v223 = vld [vmem:[#allocation5 + $0x550] sm:$0xff]
    %v224 = vld [vmem:[#allocation5 + $0x558] sm:$0xff]
    %v225 = vld [vmem:[#allocation5 + $0x560] sm:$0xff]
    %v226 = vld [vmem:[#allocation5 + $0x568] sm:$0xff]
    %v227 = vld [vmem:[#allocation5 + $0x570] sm:$0xff]
    %v228 = vld [vmem:[#allocation5 + $0x578] sm:$0xff]
    %v229 = vld [vmem:[#allocation5 + $0x580] sm:$0xff]
    %v230 = vld [vmem:[#allocation5 + $0x588] sm:$0xff]
    %v231 = vld [vmem:[#allocation5 + $0x590] sm:$0xff]
    %v232 = vld [vmem:[#allocation5 + $0x598] sm:$0xff]
    %v233 = vld [vmem:[#allocation5 + $0x5a0] sm:$0xff]
    %v234 = vld [vmem:[#allocation5 + $0x5a8] sm:$0xff]
    %v235 = vld [vmem:[#allocation5 + $0x5b0] sm:$0xff]
    %v236 = vld [vmem:[#allocation5 + $0x5b8] sm:$0xff]
    %v237 = vld [vmem:[#allocation5 + $0x5c0] sm:$0xff]
    %v238 = vld [vmem:[#allocation5 + $0x5c8] sm:$0xff]
    %v239 = vld [vmem:[#allocation5 + $0x5d0] sm:$0xff]
    %v240 = vld [vmem:[#allocation5 + $0x5d8] sm:$0xff]
    %v241 = vld [vmem:[#allocation5 + $0x5e0] sm:$0xff]
    %v242 = vld [vmem:[#allocation5 + $0x5e8] sm:$0xff]
    %v243 = vld [vmem:[#allocation5 + $0x5f0] sm:$0xff]
    %v244 = vld [vmem:[#allocation5 + $0x5f8] sm:$0xff]
    %v245 = vld [vmem:[#allocation5 + $0x600] sm:$0xff]
    %v246 = vld [vmem:[#allocation5 + $0x608] sm:$0xff]
    %v247 = vld [vmem:[#allocation5 + $0x610] sm:$0xff]
    %v248 = vld [vmem:[#allocation5 + $0x618] sm:$0xff]
    %v249 = vld [vmem:[#allocation5 + $0x620] sm:$0xff]
    %v250 = vld [vmem:[#allocation5 + $0x628] sm:$0xff]
    %v251 = vld [vmem:[#allocation5 + $0x630] sm:$0xff]
    %v252 = vld [vmem:[#allocation5 + $0x638] sm:$0xff]
    %v253 = vld [vmem:[#allocation5 + $0x640] sm:$0xff]
    %v254 = vld [vmem:[#allocation5 + $0x648] sm:$0xff]
    %v255 = vld [vmem:[#allocation5 + $0x650] sm:$0xff]
    %v256 = vld [vmem:[#allocation5 + $0x658] sm:$0xff]
    %v257 = vld [vmem:[#allocation5 + $0x660] sm:$0xff]
    %v258 = vld [vmem:[#allocation5 + $0x668] sm:$0xff]
    %v259 = vld [vmem:[#allocation5 + $0x670] sm:$0xff]
    %v260 = vld [vmem:[#allocation5 + $0x678] sm:$0xff]
    %v261 = vld [vmem:[#allocation5 + $0x680] sm:$0xff]
    %v262 = vld [vmem:[#allocation5 + $0x688] sm:$0xff]
    %v263 = vld [vmem:[#allocation5 + $0x690] sm:$0xff]
    %v264 = vld [vmem:[#allocation5 + $0x698] sm:$0xff]
    %v265 = vld [vmem:[#allocation5 + $0x6a0] sm:$0xff]
    %v266 = vld [vmem:[#allocation5 + $0x6a8] sm:$0xff]
    %v267 = vld [vmem:[#allocation5 + $0x6b0] sm:$0xff]
    %v268 = vld [vmem:[#allocation5 + $0x6b8] sm:$0xff]
    %v269 = vld [vmem:[#allocation5 + $0x6c0] sm:$0xff]
    %v270 = vld [vmem:[#allocation5 + $0x6c8] sm:$0xff]
    %v271 = vld [vmem:[#allocation5 + $0x6d0] sm:$0xff]
    %v272 = vld [vmem:[#allocation5 + $0x6d8] sm:$0xff]
    %v273 = vld [vmem:[#allocation5 + $0x6e0] sm:$0xff]
    %v274 = vld [vmem:[#allocation5 + $0x6e8] sm:$0xff]
    %v275 = vld [vmem:[#allocation5 + $0x6f0] sm:$0xff]
    %v276 = vld [vmem:[#allocation5 + $0x6f8] sm:$0xff]
    %v277 = vld [vmem:[#allocation5 + $0x700] sm:$0xff]
    %v278 = vld [vmem:[#allocation5 + $0x708] sm:$0xff]
    %v279 = vld [vmem:[#allocation5 + $0x710] sm:$0xff]
    %v280 = vld [vmem:[#allocation5 + $0x718] sm:$0xff]
    %v281 = vld [vmem:[#allocation5 + $0x720] sm:$0xff]
    %v282 = vld [vmem:[#allocation5 + $0x728] sm:$0xff]
    %v283 = vld [vmem:[#allocation5 + $0x730] sm:$0xff]
    %v284 = vld [vmem:[#allocation5 + $0x738] sm:$0xff]
    %v285 = vld [vmem:[#allocation5 + $0x740] sm:$0xff]
    %v286 = vld [vmem:[#allocation5 + $0x748] sm:$0xff]
    %v287 = vld [vmem:[#allocation5 + $0x750] sm:$0xff]
    %v288 = vld [vmem:[#allocation5 + $0x758] sm:$0xff]
    %v289 = vld [vmem:[#allocation5 + $0x760] sm:$0xff]
    %v290 = vld [vmem:[#allocation5 + $0x768] sm:$0xff]
    %v291 = vld [vmem:[#allocation5 + $0x770] sm:$0xff]
    %v292 = vld [vmem:[#allocation5 + $0x778] sm:$0xff]
    %v293 = vld [vmem:[#allocation5 + $0x780] sm:$0xff]
    %v294 = vld [vmem:[#allocation5 + $0x788] sm:$0xff]
    %v295 = vld [vmem:[#allocation5 + $0x790] sm:$0xff]
    %v296 = vld [vmem:[#allocation5 + $0x798] sm:$0xff]
    %v297 = vld [vmem:[#allocation5 + $0x7a0] sm:$0xff]
    %v298 = vld [vmem:[#allocation5 + $0x7a8] sm:$0xff]
    %v299 = vld [vmem:[#allocation5 + $0x7b0] sm:$0xff]
    %v300 = vld [vmem:[#allocation5 + $0x7b8] sm:$0xff]
    %v301 = vld [vmem:[#allocation5 + $0x7c0] sm:$0xff]
    %v302 = vld [vmem:[#allocation5 + $0x7c8] sm:$0xff]
    %v303 = vld [vmem:[#allocation5 + $0x7d0] sm:$0xff]
    %v304 = vld [vmem:[#allocation5 + $0x7d8] sm:$0xff]
    %v305 = vld [vmem:[#allocation5 + $0x7e0] sm:$0xff]
    %v306 = vld [vmem:[#allocation5 + $0x7e8] sm:$0xff]
    %v307 = vld [vmem:[#allocation5 + $0x7f0] sm:$0xff]
    %v308 = vld [vmem:[#allocation5 + $0x7f8] sm:$0xff]
    %v309 = vld [vmem:[#allocation5 + $0x800] sm:$0xff]
    %v310 = vld [vmem:[#allocation5 + $0x808] sm:$0xff]
    %v311 = vld [vmem:[#allocation5 + $0x810] sm:$0xff]
    %v312 = vld [vmem:[#allocation5 + $0x818] sm:$0xff]
    %v313 = vld [vmem:[#allocation5 + $0x820] sm:$0xff]
    %v314 = vld [vmem:[#allocation5 + $0x828] sm:$0xff]
    %v315 = vld [vmem:[#allocation5 + $0x830] sm:$0xff]
    %v316 = vld [vmem:[#allocation5 + $0x838] sm:$0xff]
    %v317 = vld [vmem:[#allocation5 + $0x840] sm:$0xff]
    %v318 = vld [vmem:[#allocation5 + $0x848] sm:$0xff]
    %v319 = vld [vmem:[#allocation5 + $0x850] sm:$0xff]
    %v320 = vld [vmem:[#allocation5 + $0x858] sm:$0xff]
    %v321 = vld [vmem:[#allocation5 + $0x860] sm:$0xff]
    %v322 = vld [vmem:[#allocation5 + $0x868] sm:$0xff]
    %v323 = vld [vmem:[#allocation5 + $0x870] sm:$0xff]
    %v324 = vld [vmem:[#allocation5 + $0x878] sm:$0xff]
    %v325 = vld [vmem:[#allocation5 + $0x880] sm:$0xff]
    %v326 = vld [vmem:[#allocation5 + $0x888] sm:$0xff]
    %v327 = vld [vmem:[#allocation5 + $0x890] sm:$0xff]
    %v328 = vld [vmem:[#allocation5 + $0x898] sm:$0xff]
    %v329 = vld [vmem:[#allocation5 + $0x8a0] sm:$0xff]
    %v330 = vld [vmem:[#allocation5 + $0x8a8] sm:$0xff]
    %v331 = vld [vmem:[#allocation5 + $0x8b0] sm:$0xff]
    %v332 = vld [vmem:[#allocation5 + $0x8b8] sm:$0xff]
    %v333 = vld [vmem:[#allocation5 + $0x8c0] sm:$0xff]
    %v334 = vld [vmem:[#allocation5 + $0x8c8] sm:$0xff]
    %v335 = vld [vmem:[#allocation5 + $0x8d0] sm:$0xff]
    %v336 = vld [vmem:[#allocation5 + $0x8d8] sm:$0xff]
    %v337 = vld [vmem:[#allocation5 + $0x8e0] sm:$0xff]
    %v338 = vld [vmem:[#allocation5 + $0x8e8] sm:$0xff]
    %v339 = vld [vmem:[#allocation5 + $0x8f0] sm:$0xff]
    %v340 = vld [vmem:[#allocation5 + $0x8f8] sm:$0xff]
    %v341 = vld [vmem:[#allocation5 + $0x900] sm:$0xff]
    %v342 = vld [vmem:[#allocation5 + $0x908] sm:$0xff]
    %v343 = vld [vmem:[#allocation5 + $0x910] sm:$0xff]
    %v344 = vld [vmem:[#allocation5 + $0x918] sm:$0xff]
    %v345 = vld [vmem:[#allocation5 + $0x920] sm:$0xff]
    %v346 = vld [vmem:[#allocation5 + $0x928] sm:$0xff]
    %v347 = vld [vmem:[#allocation5 + $0x930] sm:$0xff]
    %v348 = vld [vmem:[#allocation5 + $0x938] sm:$0xff]
    %v349 = vld [vmem:[#allocation5 + $0x940] sm:$0xff]
    %v350 = vld [vmem:[#allocation5 + $0x948] sm:$0xff]
    %v351 = vld [vmem:[#allocation5 + $0x950] sm:$0xff]
    %v352 = vld [vmem:[#allocation5 + $0x958] sm:$0xff]
    %v353 = vld [vmem:[#allocation5 + $0x960] sm:$0xff]
    %v354 = vld [vmem:[#allocation5 + $0x968] sm:$0xff]
    %v355 = vld [vmem:[#allocation5 + $0x970] sm:$0xff]
    %v356 = vld [vmem:[#allocation5 + $0x978] sm:$0xff]
    %v357 = vld [vmem:[#allocation5 + $0x980] sm:$0xff]
    %v358 = vld [vmem:[#allocation5 + $0x988] sm:$0xff]
    %v359 = vld [vmem:[#allocation5 + $0x990] sm:$0xff]
    %v360 = vld [vmem:[#allocation5 + $0x998] sm:$0xff]
    %v361 = vld [vmem:[#allocation5 + $0x9a0] sm:$0xff]
    %v362 = vld [vmem:[#allocation5 + $0x9a8] sm:$0xff]
    %v363 = vld [vmem:[#allocation5 + $0x9b0] sm:$0xff]
    %v364 = vld [vmem:[#allocation5 + $0x9b8] sm:$0xff]
    %v365 = vld [vmem:[#allocation5 + $0x9c0] sm:$0xff]
    %v366 = vld [vmem:[#allocation5 + $0x9c8] sm:$0xff]
    %v367 = vld [vmem:[#allocation5 + $0x9d0] sm:$0xff]
    %v368 = vld [vmem:[#allocation5 + $0x9d8] sm:$0xff]
    %v369 = vld [vmem:[#allocation5 + $0x9e0] sm:$0xff]
    %v370 = vld [vmem:[#allocation5 + $0x9e8] sm:$0xff]
    %v371 = vld [vmem:[#allocation5 + $0x9f0] sm:$0xff]
    %v372 = vld [vmem:[#allocation5 + $0x9f8] sm:$0xff]
    %v373 = vld [vmem:[#allocation5 + $0xa00] sm:$0xff]
    %v374 = vld [vmem:[#allocation5 + $0xa08] sm:$0xff]
    %v375 = vld [vmem:[#allocation5 + $0xa10] sm:$0xff]
    %v376 = vld [vmem:[#allocation5 + $0xa18] sm:$0xff]
    %v377 = vld [vmem:[#allocation5 + $0xa20] sm:$0xff]
    %v378 = vld [vmem:[#allocation5 + $0xa28] sm:$0xff]
    %v379 = vld [vmem:[#allocation5 + $0xa30] sm:$0xff]
    %v380 = vld [vmem:[#allocation5 + $0xa38] sm:$0xff]
    %v381 = vld [vmem:[#allocation5 + $0xa40] sm:$0xff]
    %v382 = vld [vmem:[#allocation5 + $0xa48] sm:$0xff]
    %v383 = vld [vmem:[#allocation5 + $0xa50] sm:$0xff]
    %v384 = vld [vmem:[#allocation5 + $0xa58] sm:$0xff]
    %v385 = vld [vmem:[#allocation5 + $0xa60] sm:$0xff]
    %v386 = vld [vmem:[#allocation5 + $0xa68] sm:$0xff]
    %v387 = vld [vmem:[#allocation5 + $0xa70] sm:$0xff]
    %v388 = vld [vmem:[#allocation5 + $0xa78] sm:$0xff]
    %v389 = vld [vmem:[#allocation5 + $0xa80] sm:$0xff]
    %v390 = vld [vmem:[#allocation5 + $0xa88] sm:$0xff]
    %v391 = vld [vmem:[#allocation5 + $0xa90] sm:$0xff]
    %v392 = vld [vmem:[#allocation5 + $0xa98] sm:$0xff]
    %v393 = vld [vmem:[#allocation5 + $0xaa0] sm:$0xff]
    %v394 = vld [vmem:[#allocation5 + $0xaa8] sm:$0xff]
    %v395 = vld [vmem:[#allocation5 + $0xab0] sm:$0xff]
    %v396 = vld [vmem:[#allocation5 + $0xab8] sm:$0xff]
    %v397 = vld [vmem:[#allocation5 + $0xac0] sm:$0xff]
    %v398 = vld [vmem:[#allocation5 + $0xac8] sm:$0xff]
    %v399 = vld [vmem:[#allocation5 + $0xad0] sm:$0xff]
    %v400 = vld [vmem:[#allocation5 + $0xad8] sm:$0xff]
    %v401 = vld [vmem:[#allocation5 + $0xae0] sm:$0xff]
    %v402 = vld [vmem:[#allocation5 + $0xae8] sm:$0xff]
    %v403 = vld [vmem:[#allocation5 + $0xaf0] sm:$0xff]
    %v404 = vld [vmem:[#allocation5 + $0xaf8] sm:$0xff]
    %v405 = vld [vmem:[#allocation5 + $0xb00] sm:$0xff]
    %v406 = vld [vmem:[#allocation5 + $0xb08] sm:$0xff]
    %v407 = vld [vmem:[#allocation5 + $0xb10] sm:$0xff]
    %v408 = vld [vmem:[#allocation5 + $0xb18] sm:$0xff]
    %v409 = vld [vmem:[#allocation5 + $0xb20] sm:$0xff]
    %v410 = vld [vmem:[#allocation5 + $0xb28] sm:$0xff]
    %v411 = vld [vmem:[#allocation5 + $0xb30] sm:$0xff]
    %v412 = vld [vmem:[#allocation5 + $0xb38] sm:$0xff]
    %v413 = vld [vmem:[#allocation5 + $0xb40] sm:$0xff]
    %v414 = vld [vmem:[#allocation5 + $0xb48] sm:$0xff]
    %v415 = vld [vmem:[#allocation5 + $0xb50] sm:$0xff]
    %v416 = vld [vmem:[#allocation5 + $0xb58] sm:$0xff]
    %v417 = vld [vmem:[#allocation5 + $0xb60] sm:$0xff]
    %v418 = vld [vmem:[#allocation5 + $0xb68] sm:$0xff]
    %v419 = vld [vmem:[#allocation5 + $0xb70] sm:$0xff]
    %v420 = vld [vmem:[#allocation5 + $0xb78] sm:$0xff]
    %v421 = vld [vmem:[#allocation5 + $0xb80] sm:$0xff]
    %v422 = vld [vmem:[#allocation5 + $0xb88] sm:$0xff]
    %v423 = vld [vmem:[#allocation5 + $0xb90] sm:$0xff]
    %v424 = vld [vmem:[#allocation5 + $0xb98] sm:$0xff]
    %v425 = vld [vmem:[#allocation5 + $0xba0] sm:$0xff]
    %v426 = vld [vmem:[#allocation5 + $0xba8] sm:$0xff]
    %v427 = vld [vmem:[#allocation5 + $0xbb0] sm:$0xff]
    %v428 = vld [vmem:[#allocation5 + $0xbb8] sm:$0xff]
    %v429 = vld [vmem:[#allocation5 + $0xbc0] sm:$0xff]
    %v430 = vld [vmem:[#allocation5 + $0xbc8] sm:$0xff]
    %v431 = vld [vmem:[#allocation5 + $0xbd0] sm:$0xff]
    %v432 = vld [vmem:[#allocation5 + $0xbd8] sm:$0xff]
    %v433 = vld [vmem:[#allocation5 + $0xbe0] sm:$0xff]
    %v434 = vld [vmem:[#allocation5 + $0xbe8] sm:$0xff]
    %v435 = vld [vmem:[#allocation5 + $0xbf0] sm:$0xff]
    %v436 = vld [vmem:[#allocation5 + $0xbf8] sm:$0xff]
    %v437 = vld [vmem:[#allocation5 + $0xc00] sm:$0xff]
    %v438 = vld [vmem:[#allocation5 + $0xc08] sm:$0xff]
    %v439 = vld [vmem:[#allocation5 + $0xc10] sm:$0xff]
    %v440 = vld [vmem:[#allocation5 + $0xc18] sm:$0xff]
    %v441 = vld [vmem:[#allocation5 + $0xc20] sm:$0xff]
    %v442 = vld [vmem:[#allocation5 + $0xc28] sm:$0xff]
    %v443 = vld [vmem:[#allocation5 + $0xc30] sm:$0xff]
    %v444 = vld [vmem:[#allocation5 + $0xc38] sm:$0xff]
    %v445 = vld [vmem:[#allocation5 + $0xc40] sm:$0x3]
    %v446 = vld [vmem:[#allocation5 + $0xc48] sm:$0x3]
    %v447 = vld [vmem:[#allocation5 + $0xc50] sm:$0x3]
    %v448 = vld [vmem:[#allocation5 + $0xc58] sm:$0x3]
    %v449 = vld [vmem:[#allocation5 + $0xc60] sm:$0x3]
    %v450 = vld [vmem:[#allocation5 + $0xc68] sm:$0x3]
    %v451 = vld [vmem:[#allocation5 + $0xc70] sm:$0x3]
    %v452 = vld [vmem:[#allocation7] sm:$0xff]
    %v454 = vlaneseq
    %v455 = vshrl.u32 %v454, 7
    %v456 = vsub.s32 0, %v455
    %v457 = vrot.slane %v52, %v456
    %v458 = vlaneseq
    %v459 = vshrl.u32 %v458, 7
    %v460 = vsub.s32 1, %v459
    %v461 = vrot.slane %v52, %v460
    %v462 = vlaneseq
    %v463 = vshrl.u32 %v462, 7
    %v464 = vsub.s32 2, %v463
    %v465 = vrot.slane %v52, %v464
    %v466 = vlaneseq
    %v467 = vshrl.u32 %v466, 7
    %v468 = vsub.s32 3, %v467
    %v469 = vrot.slane %v52, %v468
    %v474 = vlaneseq
    %v475 = vshrl.u32 %v474, 7
    %v476 = vsub.s32 0, %v475
    %v477 = vrot.slane %v452, %v476
    %v478 = vlaneseq
    %v479 = vshrl.u32 %v478, 7
    %v480 = vsub.s32 1, %v479
    %v481 = vrot.slane %v452, %v480
    %v482 = vlaneseq
    %v483 = vshrl.u32 %v482, 7
    %v484 = vsub.s32 2, %v483
    %v485 = vrot.slane %v452, %v484
    %v486 = vlaneseq
    %v487 = vshrl.u32 %v486, 7
    %v488 = vsub.s32 3, %v487
    %v489 = vrot.slane %v452, %v488
    %v490 = vlaneseq
    %v491 = vshrl.u32 %v490, 7
    %v492 = vsub.s32 4, %v491
    %v493 = vrot.slane %v452, %v492
    %v494 = vlaneseq
    %v495 = vshrl.u32 %v494, 7
    %v496 = vsub.s32 5, %v495
    %v497 = vrot.slane %v452, %v496
    %v498 = vlaneseq
    %v499 = vshrl.u32 %v498, 7
    %v500 = vsub.s32 6, %v499
    %v501 = vrot.slane %v452, %v500
    %vm509 = vcmask 539648
    %v510 = vsel %vm509, %v469, 0
    %vm512 = vcmask 1041408
    %v514 = vsel %vm512, %v445, 0
    %v517 = vsel %vm512, %v446, 0
    %v520 = vsel %vm512, %v447, 0
    %v523 = vsel %vm512, %v448, 0
    %v526 = vsel %vm512, %v449, 0
    %v529 = vsel %vm512, %v450, 0
    %v532 = vsel %vm512, %v451, 0
    %534 = vmatprep.subr.mxu0 %v54
    %535 = vmatpush1.msra.mxu0 %v53
    %536 = vmatprep.subr.mxu0 %v61
    %537 = vmatpush1.msra.mxu0 %v60
    %538 = vmatprep.subr.mxu0 %v68
    %539 = vmatpush1.msra.mxu0 %v67
    %540 = vmatprep.subr.mxu0 %v75
    %541 = vmatpush1.msra.mxu0 %v74
    %542 = vmatprep.subr.mxu0 %v82
    %543 = vmatpush1.msra.mxu0 %v81
    %544 = vmatprep.subr.mxu0 %v89
    %545 = vmatpush1.msra.mxu0 %v88
    %546 = vmatprep.subr.mxu0 %v96
    %547 = vmatpush1.msra.mxu0 %v95
    %548 = vmatprep.subr.mxu0 %v103
    %549 = vmatpush1.msra.mxu0 %v102
    %550 = vmatprep.subr.mxu0 %v110
    %551 = vmatpush1.msra.mxu0 %v109
    %552 = vmatprep.subr.mxu0 %v117
    %553 = vmatpush1.msra.mxu0 %v116
    %554 = vmatprep.subr.mxu0 %v124
    %555 = vmatpush1.msra.mxu0 %v123
    %556 = vmatprep.subr.mxu0 %v131
    %557 = vmatpush1.msra.mxu0 %v130
    %558 = vmatprep.subr.mxu0 %v138
    %559 = vmatpush1.msra.mxu0 %v137
    %560 = vmatprep.subr.mxu0 %v145
    %561 = vmatpush1.msra.mxu0 %v144
    %562 = vmatprep.subr.mxu0 %v152
    %563 = vmatpush1.msra.mxu0 %v151
    %564 = vmatprep.subr.mxu0 %v159
    %565 = vmatpush1.msra.mxu0 %v158
    %566 = vmatprep.subr.mxu0 %v166
    %567 = vmatpush1.msra.mxu0 %v165
    %568 = vmatprep.subr.mxu0 %v173
    %569 = vmatpush1.msra.mxu0 %v172
    %570 = vmatprep.subr.mxu0 %v180
    %571 = vmatpush1.msra.mxu0 %v179
    %572 = vmatprep.subr.mxu0 %v187
    %573 = vmatpush1.msra.mxu0 %v186
    %574 = vmatprep.subr.mxu0 %v194
    %575 = vmatpush1.msra.mxu0 %v193
    %576 = vmatprep.subr.mxu0 %v201
    %577 = vmatpush1.msra.mxu0 %v200
    %578 = vmatprep.subr.mxu0 %v208
    %579 = vmatpush1.msra.mxu0 %v207
    %580 = vmatprep.subr.mxu0 %v215
    %581 = vmatpush1.msra.mxu0 %v214
    %582 = vmatprep.subr.mxu0 %v222
    %583 = vmatpush1.msra.mxu0 %v221
    %584 = vmatprep.subr.mxu0 %v229
    %585 = vmatpush1.msra.mxu0 %v228
    %586 = vmatprep.subr.mxu0 %v236
    %587 = vmatpush1.msra.mxu0 %v235
    %588 = vmatprep.subr.mxu0 %v243
    %589 = vmatpush1.msra.mxu0 %v242
    %590 = vmatprep.subr.mxu0 %v250
    %591 = vmatpush1.msra.mxu0 %v249
    %592 = vmatprep.subr.mxu0 %v257
    %593 = vmatpush1.msra.mxu0 %v256
    %594 = vmatprep.subr.mxu0 %v264
    %595 = vmatpush1.msra.mxu0 %v263
    %596 = vmatprep.subr.mxu0 %v271
    %597 = vmatpush1.msra.mxu0 %v270
    %598 = vmatprep.mubr.f32.mxu0 %v461
    %599 = vmatmul.mubr.f32.gmra.mrb[0].mxu0 %v457
    %v600 = vpop.f32.mrb[0].mxu0
    %v601 = vadd.f32 %v477, %v600
    %v602 = vpop.f32.mrb[0].mxu0
    %v603 = vadd.f32 %v481, %v602
    %604 = vdwg.mxu0
    %605 = vmatprep.subr.mxu0 %v278
    %606 = vmatpush1.msra.mxu0 %v277
    %607 = vmatprep.subr.mxu0 %v285
    %608 = vmatpush1.msra.mxu0 %v284
    %609 = vmatprep.subr.mxu0 %v292
    %610 = vmatpush1.msra.mxu0 %v291
    %611 = vmatprep.subr.mxu0 %v299
    %612 = vmatpush1.msra.mxu0 %v298
    %613 = vmatprep.subr.mxu0 %v306
    %614 = vmatpush1.msra.mxu0 %v305
    %615 = vmatprep.subr.mxu0 %v313
    %616 = vmatpush1.msra.mxu0 %v312
    %617 = vmatprep.subr.mxu0 %v320
    %618 = vmatpush1.msra.mxu0 %v319
    %619 = vmatprep.subr.mxu0 %v327
    %620 = vmatpush1.msra.mxu0 %v326
    %621 = vmatprep.subr.mxu0 %v334
    %622 = vmatpush1.msra.mxu0 %v333
    %623 = vmatprep.subr.mxu0 %v341
    %624 = vmatpush1.msra.mxu0 %v340
    %625 = vmatprep.subr.mxu0 %v348
    %626 = vmatpush1.msra.mxu0 %v347
    %627 = vmatprep.subr.mxu0 %v355
    %628 = vmatpush1.msra.mxu0 %v354
    %629 = vmatprep.subr.mxu0 %v362
    %630 = vmatpush1.msra.mxu0 %v361
    %631 = vmatprep.subr.mxu0 %v369
    %632 = vmatpush1.msra.mxu0 %v368
    %633 = vmatprep.subr.mxu0 %v376
    %634 = vmatpush1.msra.mxu0 %v375
    %635 = vmatprep.subr.mxu0 %v383
    %636 = vmatpush1.msra.mxu0 %v382
    %637 = vmatprep.subr.mxu0 %v390
    %638 = vmatpush1.msra.mxu0 %v389
    %639 = vmatprep.subr.mxu0 %v397
    %640 = vmatpush1.msra.mxu0 %v396
    %641 = vmatprep.subr.mxu0 %v404
    %642 = vmatpush1.msra.mxu0 %v403
    %643 = vmatprep.subr.mxu0 %v411
    %644 = vmatpush1.msra.mxu0 %v410
    %645 = vmatprep.subr.mxu0 %v418
    %646 = vmatpush1.msra.mxu0 %v417
    %647 = vmatprep.subr.mxu0 %v425
    %648 = vmatpush1.msra.mxu0 %v424
    %649 = vmatprep.subr.mxu0 %v432
    %650 = vmatpush1.msra.mxu0 %v431
    %651 = vmatprep.subr.mxu0 %v439
    %652 = vmatpush1.msra.mxu0 %v438
    %653 = vmatprep.subr.mxu0 %v517
    %654 = vmatpush1.msra.mxu0 %v514
    %655 = vmatprep.subr.mxu0 0.0
    %656 = vmatpush1.msra.mxu0 0.0
    %657 = vmatprep.subr.mxu0 0.0
    %658 = vmatpush1.msra.mxu0 0.0
    %659 = vmatprep.subr.mxu0 0.0
    %660 = vmatpush1.msra.mxu0 0.0
    %661 = vmatprep.subr.mxu0 0.0
    %662 = vmatpush1.msra.mxu0 0.0
    %663 = vmatprep.subr.mxu0 0.0
    %664 = vmatpush1.msra.mxu0 0.0
    %665 = vmatprep.subr.mxu0 0.0
    %666 = vmatpush1.msra.mxu0 0.0
    %667 = vmatprep.subr.mxu0 0.0
    %668 = vmatpush1.msra.mxu0 0.0
    %669 = vmatprep.mubr.f32.mxu0 %v510
    %670 = vmatmul.mubr.f32.gmra.mrb[0].mxu0 %v465
    %v671 = vpop.f32.mrb[0].mxu0
    %v672 = vadd.f32 %v601, %v671
    %v673 = vpop.f32.mrb[0].mxu0
    %v674 = vadd.f32 %v603, %v673
    %675 = vdwg.mxu0
    %676 = vmatprep.subr.mxu0 %v56
    %677 = vmatpush1.msra.mxu0 %v55
    %678 = vmatprep.subr.mxu0 %v63
    %679 = vmatpush1.msra.mxu0 %v62
    %680 = vmatprep.subr.mxu0 %v70
    %681 = vmatpush1.msra.mxu0 %v69
    %682 = vmatprep.subr.mxu0 %v77
    %683 = vmatpush1.msra.mxu0 %v76
    %684 = vmatprep.subr.mxu0 %v84
    %685 = vmatpush1.msra.mxu0 %v83
    %686 = vmatprep.subr.mxu0 %v91
    %687 = vmatpush1.msra.mxu0 %v90
    %688 = vmatprep.subr.mxu0 %v98
    %689 = vmatpush1.msra.mxu0 %v97
    %690 = vmatprep.subr.mxu0 %v105
    %691 = vmatpush1.msra.mxu0 %v104
    %692 = vmatprep.subr.mxu0 %v112
    %693 = vmatpush1.msra.mxu0 %v111
    %694 = vmatprep.subr.mxu0 %v119
    %695 = vmatpush1.msra.mxu0 %v118
    %696 = vmatprep.subr.mxu0 %v126
    %697 = vmatpush1.msra.mxu0 %v125
    %698 = vmatprep.subr.mxu0 %v133
    %699 = vmatpush1.msra.mxu0 %v132
    %700 = vmatprep.subr.mxu0 %v140
    %701 = vmatpush1.msra.mxu0 %v139
    %702 = vmatprep.subr.mxu0 %v147
    %703 = vmatpush1.msra.mxu0 %v146
    %704 = vmatprep.subr.mxu0 %v154
    %705 = vmatpush1.msra.mxu0 %v153
    %706 = vmatprep.subr.mxu0 %v161
    %707 = vmatpush1.msra.mxu0 %v160
    %708 = vmatprep.subr.mxu0 %v168
    %709 = vmatpush1.msra.mxu0 %v167
    %710 = vmatprep.subr.mxu0 %v175
    %711 = vmatpush1.msra.mxu0 %v174
    %712 = vmatprep.subr.mxu0 %v182
    %713 = vmatpush1.msra.mxu0 %v181
    %714 = vmatprep.subr.mxu0 %v189
    %715 = vmatpush1.msra.mxu0 %v188
    %716 = vmatprep.subr.mxu0 %v196
    %717 = vmatpush1.msra.mxu0 %v195
    %718 = vmatprep.subr.mxu0 %v203
    %719 = vmatpush1.msra.mxu0 %v202
    %720 = vmatprep.subr.mxu0 %v210
    %721 = vmatpush1.msra.mxu0 %v209
    %722 = vmatprep.subr.mxu0 %v217
    %723 = vmatpush1.msra.mxu0 %v216
    %724 = vmatprep.subr.mxu0 %v224
    %725 = vmatpush1.msra.mxu0 %v223
    %726 = vmatprep.subr.mxu0 %v231
    %727 = vmatpush1.msra.mxu0 %v230
    %728 = vmatprep.subr.mxu0 %v238
    %729 = vmatpush1.msra.mxu0 %v237
    %730 = vmatprep.subr.mxu0 %v245
    %731 = vmatpush1.msra.mxu0 %v244
    %732 = vmatprep.subr.mxu0 %v252
    %733 = vmatpush1.msra.mxu0 %v251
    %734 = vmatprep.subr.mxu0 %v259
    %735 = vmatpush1.msra.mxu0 %v258
    %736 = vmatprep.subr.mxu0 %v266
    %737 = vmatpush1.msra.mxu0 %v265
    %738 = vmatprep.subr.mxu0 %v273
    %739 = vmatpush1.msra.mxu0 %v272
    %740 = vmatprep.mubr.f32.mxu0 %v461
    %741 = vmatmul.mubr.f32.gmra.mrb[0].mxu0 %v457
    %v742 = vpop.f32.mrb[0].mxu0
    %v743 = vadd.f32 %v485, %v742
    %v744 = vpop.f32.mrb[0].mxu0
    %v745 = vadd.f32 %v489, %v744
    %746 = vdwg.mxu0
    %747 = vmatprep.subr.mxu0 %v280
    %748 = vmatpush1.msra.mxu0 %v279
    %749 = vmatprep.subr.mxu0 %v287
    %750 = vmatpush1.msra.mxu0 %v286
    %751 = vmatprep.subr.mxu0 %v294
    %752 = vmatpush1.msra.mxu0 %v293
    %753 = vmatprep.subr.mxu0 %v301
    %754 = vmatpush1.msra.mxu0 %v300
    %755 = vmatprep.subr.mxu0 %v308
    %756 = vmatpush1.msra.mxu0 %v307
    %757 = vmatprep.subr.mxu0 %v315
    %758 = vmatpush1.msra.mxu0 %v314
    %759 = vmatprep.subr.mxu0 %v322
    %760 = vmatpush1.msra.mxu0 %v321
    %761 = vmatprep.subr.mxu0 %v329
    %762 = vmatpush1.msra.mxu0 %v328
    %763 = vmatprep.subr.mxu0 %v336
    %764 = vmatpush1.msra.mxu0 %v335
    %765 = vmatprep.subr.mxu0 %v343
    %766 = vmatpush1.msra.mxu0 %v342
    %767 = vmatprep.subr.mxu0 %v350
    %768 = vmatpush1.msra.mxu0 %v349
    %769 = vmatprep.subr.mxu0 %v357
    %770 = vmatpush1.msra.mxu0 %v356
    %771 = vmatprep.subr.mxu0 %v364
    %772 = vmatpush1.msra.mxu0 %v363
    %773 = vmatprep.subr.mxu0 %v371
    %774 = vmatpush1.msra.mxu0 %v370
    %775 = vmatprep.subr.mxu0 %v378
    %776 = vmatpush1.msra.mxu0 %v377
    %777 = vmatprep.subr.mxu0 %v385
    %778 = vmatpush1.msra.mxu0 %v384
    %779 = vmatprep.subr.mxu0 %v392
    %780 = vmatpush1.msra.mxu0 %v391
    %781 = vmatprep.subr.mxu0 %v399
    %782 = vmatpush1.msra.mxu0 %v398
    %783 = vmatprep.subr.mxu0 %v406
    %784 = vmatpush1.msra.mxu0 %v405
    %785 = vmatprep.subr.mxu0 %v413
    %786 = vmatpush1.msra.mxu0 %v412
    %787 = vmatprep.subr.mxu0 %v420
    %788 = vmatpush1.msra.mxu0 %v419
    %789 = vmatprep.subr.mxu0 %v427
    %790 = vmatpush1.msra.mxu0 %v426
    %791 = vmatprep.subr.mxu0 %v434
    %792 = vmatpush1.msra.mxu0 %v433
    %793 = vmatprep.subr.mxu0 %v441
    %794 = vmatpush1.msra.mxu0 %v440
    %795 = vmatprep.subr.mxu0 %v523
    %796 = vmatpush1.msra.mxu0 %v520
    %797 = vmatprep.subr.mxu0 0.0
    %798 = vmatpush1.msra.mxu0 0.0
    %799 = vmatprep.subr.mxu0 0.0
    %800 = vmatpush1.msra.mxu0 0.0
    %801 = vmatprep.subr.mxu0 0.0
    %802 = vmatpush1.msra.mxu0 0.0
    %803 = vmatprep.subr.mxu0 0.0
    %804 = vmatpush1.msra.mxu0 0.0
    %805 = vmatprep.subr.mxu0 0.0
    %806 = vmatpush1.msra.mxu0 0.0
    %807 = vmatprep.subr.mxu0 0.0
    %808 = vmatpush1.msra.mxu0 0.0
    %809 = vmatprep.subr.mxu0 0.0
    %810 = vmatpush1.msra.mxu0 0.0
    %811 = vmatprep.mubr.f32.mxu0 %v510
    %812 = vmatmul.mubr.f32.gmra.mrb[0].mxu0 %v465
    %v813 = vpop.f32.mrb[0].mxu0
    %v814 = vadd.f32 %v743, %v813
    %v815 = vpop.f32.mrb[0].mxu0
    %v816 = vadd.f32 %v745, %v815
    %817 = vdwg.mxu0
    %818 = vmatprep.subr.mxu0 %v58
    %819 = vmatpush1.msra.mxu0 %v57
    %820 = vmatprep.subr.mxu0 %v65
    %821 = vmatpush1.msra.mxu0 %v64
    %822 = vmatprep.subr.mxu0 %v72
    %823 = vmatpush1.msra.mxu0 %v71
    %824 = vmatprep.subr.mxu0 %v79
    %825 = vmatpush1.msra.mxu0 %v78
    %826 = vmatprep.subr.mxu0 %v86
    %827 = vmatpush1.msra.mxu0 %v85
    %828 = vmatprep.subr.mxu0 %v93
    %829 = vmatpush1.msra.mxu0 %v92
    %830 = vmatprep.subr.mxu0 %v100
    %831 = vmatpush1.msra.mxu0 %v99
    %832 = vmatprep.subr.mxu0 %v107
    %833 = vmatpush1.msra.mxu0 %v106
    %834 = vmatprep.subr.mxu0 %v114
    %835 = vmatpush1.msra.mxu0 %v113
    %836 = vmatprep.subr.mxu0 %v121
    %837 = vmatpush1.msra.mxu0 %v120
    %838 = vmatprep.subr.mxu0 %v128
    %839 = vmatpush1.msra.mxu0 %v127
    %840 = vmatprep.subr.mxu0 %v135
    %841 = vmatpush1.msra.mxu0 %v134
    %842 = vmatprep.subr.mxu0 %v142
    %843 = vmatpush1.msra.mxu0 %v141
    %844 = vmatprep.subr.mxu0 %v149
    %845 = vmatpush1.msra.mxu0 %v148
    %846 = vmatprep.subr.mxu0 %v156
    %847 = vmatpush1.msra.mxu0 %v155
    %848 = vmatprep.subr.mxu0 %v163
    %849 = vmatpush1.msra.mxu0 %v162
    %850 = vmatprep.subr.mxu0 %v170
    %851 = vmatpush1.msra.mxu0 %v169
    %852 = vmatprep.subr.mxu0 %v177
    %853 = vmatpush1.msra.mxu0 %v176
    %854 = vmatprep.subr.mxu0 %v184
    %855 = vmatpush1.msra.mxu0 %v183
    %856 = vmatprep.subr.mxu0 %v191
    %857 = vmatpush1.msra.mxu0 %v190
    %858 = vmatprep.subr.mxu0 %v198
    %859 = vmatpush1.msra.mxu0 %v197
    %860 = vmatprep.subr.mxu0 %v205
    %861 = vmatpush1.msra.mxu0 %v204
    %862 = vmatprep.subr.mxu0 %v212
    %863 = vmatpush1.msra.mxu0 %v211
    %864 = vmatprep.subr.mxu0 %v219
    %865 = vmatpush1.msra.mxu0 %v218
    %866 = vmatprep.subr.mxu0 %v226
    %867 = vmatpush1.msra.mxu0 %v225
    %868 = vmatprep.subr.mxu0 %v233
    %869 = vmatpush1.msra.mxu0 %v232
    %870 = vmatprep.subr.mxu0 %v240
    %871 = vmatpush1.msra.mxu0 %v239
    %872 = vmatprep.subr.mxu0 %v247
    %873 = vmatpush1.msra.mxu0 %v246
    %874 = vmatprep.subr.mxu0 %v254
    %875 = vmatpush1.msra.mxu0 %v253
    %876 = vmatprep.subr.mxu0 %v261
    %877 = vmatpush1.msra.mxu0 %v260
    %878 = vmatprep.subr.mxu0 %v268
    %879 = vmatpush1.msra.mxu0 %v267
    %880 = vmatprep.subr.mxu0 %v275
    %881 = vmatpush1.msra.mxu0 %v274
    %882 = vmatprep.mubr.f32.mxu0 %v461
    %883 = vmatmul.mubr.f32.gmra.mrb[0].mxu0 %v457
    %v884 = vpop.f32.mrb[0].mxu0
    %v885 = vadd.f32 %v493, %v884
    %v886 = vpop.f32.mrb[0].mxu0
    %v887 = vadd.f32 %v497, %v886
    %888 = vdwg.mxu0
    %889 = vmatprep.subr.mxu0 %v282
    %890 = vmatpush1.msra.mxu0 %v281
    %891 = vmatprep.subr.mxu0 %v289
    %892 = vmatpush1.msra.mxu0 %v288
    %893 = vmatprep.subr.mxu0 %v296
    %894 = vmatpush1.msra.mxu0 %v295
    %895 = vmatprep.subr.mxu0 %v303
    %896 = vmatpush1.msra.mxu0 %v302
    %897 = vmatprep.subr.mxu0 %v310
    %898 = vmatpush1.msra.mxu0 %v309
    %899 = vmatprep.subr.mxu0 %v317
    %900 = vmatpush1.msra.mxu0 %v316
    %901 = vmatprep.subr.mxu0 %v324
    %902 = vmatpush1.msra.mxu0 %v323
    %903 = vmatprep.subr.mxu0 %v331
    %904 = vmatpush1.msra.mxu0 %v330
    %905 = vmatprep.subr.mxu0 %v338
    %906 = vmatpush1.msra.mxu0 %v337
    %907 = vmatprep.subr.mxu0 %v345
    %908 = vmatpush1.msra.mxu0 %v344
    %909 = vmatprep.subr.mxu0 %v352
    %910 = vmatpush1.msra.mxu0 %v351
    %911 = vmatprep.subr.mxu0 %v359
    %912 = vmatpush1.msra.mxu0 %v358
    %913 = vmatprep.subr.mxu0 %v366
    %914 = vmatpush1.msra.mxu0 %v365
    %915 = vmatprep.subr.mxu0 %v373
    %916 = vmatpush1.msra.mxu0 %v372
    %917 = vmatprep.subr.mxu0 %v380
    %918 = vmatpush1.msra.mxu0 %v379
    %919 = vmatprep.subr.mxu0 %v387
    %920 = vmatpush1.msra.mxu0 %v386
    %921 = vmatprep.subr.mxu0 %v394
    %922 = vmatpush1.msra.mxu0 %v393
    %923 = vmatprep.subr.mxu0 %v401
    %924 = vmatpush1.msra.mxu0 %v400
    %925 = vmatprep.subr.mxu0 %v408
    %926 = vmatpush1.msra.mxu0 %v407
    %927 = vmatprep.subr.mxu0 %v415
    %928 = vmatpush1.msra.mxu0 %v414
    %929 = vmatprep.subr.mxu0 %v422
    %930 = vmatpush1.msra.mxu0 %v421
    %931 = vmatprep.subr.mxu0 %v429
    %932 = vmatpush1.msra.mxu0 %v428
    %933 = vmatprep.subr.mxu0 %v436
    %934 = vmatpush1.msra.mxu0 %v435
    %935 = vmatprep.subr.mxu0 %v443
    %936 = vmatpush1.msra.mxu0 %v442
    %937 = vmatprep.subr.mxu0 %v529
    %938 = vmatpush1.msra.mxu0 %v526
    %939 = vmatprep.subr.mxu0 0.0
    %940 = vmatpush1.msra.mxu0 0.0
    %941 = vmatprep.subr.mxu0 0.0
    %942 = vmatpush1.msra.mxu0 0.0
    %943 = vmatprep.subr.mxu0 0.0
    %944 = vmatpush1.msra.mxu0 0.0
    %945 = vmatprep.subr.mxu0 0.0
    %946 = vmatpush1.msra.mxu0 0.0
    %947 = vmatprep.subr.mxu0 0.0
    %948 = vmatpush1.msra.mxu0 0.0
    %949 = vmatprep.subr.mxu0 0.0
    %950 = vmatpush1.msra.mxu0 0.0
    %951 = vmatprep.subr.mxu0 0.0
    %952 = vmatpush1.msra.mxu0 0.0
    %953 = vmatprep.mubr.f32.mxu0 %v510
    %954 = vmatmul.mubr.f32.gmra.mrb[0].mxu0 %v465
    %v955 = vpop.f32.mrb[0].mxu0
    %v956 = vadd.f32 %v885, %v955
    %v957 = vpop.f32.mrb[0].mxu0
    %v958 = vadd.f32 %v887, %v957
    %959 = vdwg.mxu0
    %960 = vmatprep.subr.mxu0 0.0
    %961 = vmatpush1.msra.mxu0 %v59
    %962 = vmatprep.subr.mxu0 0.0
    %963 = vmatpush1.msra.mxu0 %v66
    %964 = vmatprep.subr.mxu0 0.0
    %965 = vmatpush1.msra.mxu0 %v73
    %966 = vmatprep.subr.mxu0 0.0
    %967 = vmatpush1.msra.mxu0 %v80
    %968 = vmatprep.subr.mxu0 0.0
    %969 = vmatpush1.msra.mxu0 %v87
    %970 = vmatprep.subr.mxu0 0.0
    %971 = vmatpush1.msra.mxu0 %v94
    %972 = vmatprep.subr.mxu0 0.0
    %973 = vmatpush1.msra.mxu0 %v101
    %974 = vmatprep.subr.mxu0 0.0
    %975 = vmatpush1.msra.mxu0 %v108
    %976 = vmatprep.subr.mxu0 0.0
    %977 = vmatpush1.msra.mxu0 %v115
    %978 = vmatprep.subr.mxu0 0.0
    %979 = vmatpush1.msra.mxu0 %v122
    %980 = vmatprep.subr.mxu0 0.0
    %981 = vmatpush1.msra.mxu0 %v129
    %982 = vmatprep.subr.mxu0 0.0
    %983 = vmatpush1.msra.mxu0 %v136
    %984 = vmatprep.subr.mxu0 0.0
    %985 = vmatpush1.msra.mxu0 %v143
    %986 = vmatprep.subr.mxu0 0.0
    %987 = vmatpush1.msra.mxu0 %v150
    %988 = vmatprep.subr.mxu0 0.0
    %989 = vmatpush1.msra.mxu0 %v157
    %990 = vmatprep.subr.mxu0 0.0
    %991 = vmatpush1.msra.mxu0 %v164
    %992 = vmatprep.subr.mxu0 0.0
    %993 = vmatpush1.msra.mxu0 %v171
    %994 = vmatprep.subr.mxu0 0.0
    %995 = vmatpush1.msra.mxu0 %v178
    %996 = vmatprep.subr.mxu0 0.0
    %997 = vmatpush1.msra.mxu0 %v185
    %998 = vmatprep.subr.mxu0 0.0
    %999 = vmatpush1.msra.mxu0 %v192
    %1000 = vmatprep.subr.mxu0 0.0
    %1001 = vmatpush1.msra.mxu0 %v199
    %1002 = vmatprep.subr.mxu0 0.0
    %1003 = vmatpush1.msra.mxu0 %v206
    %1004 = vmatprep.subr.mxu0 0.0
    %1005 = vmatpush1.msra.mxu0 %v213
    %1006 = vmatprep.subr.mxu0 0.0
    %1007 = vmatpush1.msra.mxu0 %v220
    %1008 = vmatprep.subr.mxu0 0.0
    %1009 = vmatpush1.msra.mxu0 %v227
    %1010 = vmatprep.subr.mxu0 0.0
    %1011 = vmatpush1.msra.mxu0 %v234
    %1012 = vmatprep.subr.mxu0 0.0
    %1013 = vmatpush1.msra.mxu0 %v241
    %1014 = vmatprep.subr.mxu0 0.0
    %1015 = vmatpush1.msra.mxu0 %v248
    %1016 = vmatprep.subr.mxu0 0.0
    %1017 = vmatpush1.msra.mxu0 %v255
    %1018 = vmatprep.subr.mxu0 0.0
    %1019 = vmatpush1.msra.mxu0 %v262
    %1020 = vmatprep.subr.mxu0 0.0
    %1021 = vmatpush1.msra.mxu0 %v269
    %1022 = vmatprep.subr.mxu0 0.0
    %1023 = vmatpush1.msra.mxu0 %v276
    %1024 = vmatprep.mubr.f32.mxu0 %v461
    %1025 = vmatmul.mubr.f32.gmra.mrb[0].mxu0 %v457
    %v1026 = vpop.f32.mrb[0].mxu0
    %v1027 = vadd.f32 %v501, %v1026
    %v1028 = vpop.f32.mrb[0].mxu0
    %1029 = vdwg.mxu0
    %1030 = vmatprep.subr.mxu0 0.0
    %1031 = vmatpush1.msra.mxu0 %v283
    %1032 = vmatprep.subr.mxu0 0.0
    %1033 = vmatpush1.msra.mxu0 %v290
    %1034 = vmatprep.subr.mxu0 0.0
    %1035 = vmatpush1.msra.mxu0 %v297
    %1036 = vmatprep.subr.mxu0 0.0
    %1037 = vmatpush1.msra.mxu0 %v304
    %1038 = vmatprep.subr.mxu0 0.0
    %1039 = vmatpush1.msra.mxu0 %v311
    %1040 = vmatprep.subr.mxu0 0.0
    %1041 = vmatpush1.msra.mxu0 %v318
    %1042 = vmatprep.subr.mxu0 0.0
    %1043 = vmatpush1.msra.mxu0 %v325
    %1044 = vmatprep.subr.mxu0 0.0
    %1045 = vmatpush1.msra.mxu0 %v332
    %1046 = vmatprep.subr.mxu0 0.0
    %1047 = vmatpush1.msra.mxu0 %v339
    %1048 = vmatprep.subr.mxu0 0.0
    %1049 = vmatpush1.msra.mxu0 %v346
    %1050 = vmatprep.subr.mxu0 0.0
    %1051 = vmatpush1.msra.mxu0 %v353
    %1052 = vmatprep.subr.mxu0 0.0
    %1053 = vmatpush1.msra.mxu0 %v360
    %1054 = vmatprep.subr.mxu0 0.0
    %1055 = vmatpush1.msra.mxu0 %v367
    %1056 = vmatprep.subr.mxu0 0.0
    %1057 = vmatpush1.msra.mxu0 %v374
    %1058 = vmatprep.subr.mxu0 0.0
    %1059 = vmatpush1.msra.mxu0 %v381
    %1060 = vmatprep.subr.mxu0 0.0
    %1061 = vmatpush1.msra.mxu0 %v388
    %1062 = vmatprep.subr.mxu0 0.0
    %1063 = vmatpush1.msra.mxu0 %v395
    %1064 = vmatprep.subr.mxu0 0.0
    %1065 = vmatpush1.msra.mxu0 %v402
    %1066 = vmatprep.subr.mxu0 0.0
    %1067 = vmatpush1.msra.mxu0 %v409
    %1068 = vmatprep.subr.mxu0 0.0
    %1069 = vmatpush1.msra.mxu0 %v416
    %1070 = vmatprep.subr.mxu0 0.0
    %1071 = vmatpush1.msra.mxu0 %v423
    %1072 = vmatprep.subr.mxu0 0.0
    %1073 = vmatpush1.msra.mxu0 %v430
    %1074 = vmatprep.subr.mxu0 0.0
    %1075 = vmatpush1.msra.mxu0 %v437
    %1076 = vmatprep.subr.mxu0 0.0
    %1077 = vmatpush1.msra.mxu0 %v444
    %1078 = vmatprep.subr.mxu0 0.0
    %1079 = vmatpush1.msra.mxu0 %v532
    %1080 = vmatprep.subr.mxu0 0.0
    %1081 = vmatpush1.msra.mxu0 0.0
    %1082 = vmatprep.subr.mxu0 0.0
    %1083 = vmatpush1.msra.mxu0 0.0
    %1084 = vmatprep.subr.mxu0 0.0
    %1085 = vmatpush1.msra.mxu0 0.0
    %1086 = vmatprep.subr.mxu0 0.0
    %1087 = vmatpush1.msra.mxu0 0.0
    %1088 = vmatprep.subr.mxu0 0.0
    %1089 = vmatpush1.msra.mxu0 0.0
    %1090 = vmatprep.subr.mxu0 0.0
    %1091 = vmatpush1.msra.mxu0 0.0
    %1092 = vmatprep.subr.mxu0 0.0
    %1093 = vmatpush1.msra.mxu0 0.0
    %1094 = vmatprep.mubr.f32.mxu0 %v510
    %1095 = vmatmul.mubr.f32.gmra.mrb[0].mxu0 %v465
    %v1096 = vpop.f32.mrb[0].mxu0
    %v1097 = vadd.f32 %v1027, %v1096
    %v1098 = vpop.f32.mrb[0].mxu0
    %1099 = vdwg.mxu0
    %v1100 = vsub.f32 0.0, %v672
    %v1101 = vsub.f32 0.0, %v674
    %v1102 = vsub.f32 0.0, %v814
    %v1103 = vsub.f32 0.0, %v816
    %v1104 = vsub.f32 0.0, %v956
    %v1105 = vsub.f32 0.0, %v958
    %v1106 = vsub.f32 0.0, %v1097
    %v1107 = vmul.f32 %v1100, 1.442695
    %v1108 = vpow.pop %v1107
    %v1109 = vmul.f32 %v1101, 1.442695
    %v1110 = vpow.pop %v1109
    %v1111 = vmul.f32 %v1102, 1.442695
    %v1112 = vpow.pop %v1111
    %v1113 = vmul.f32 %v1103, 1.442695
    %v1114 = vpow.pop %v1113
    %v1115 = vmul.f32 %v1104, 1.442695
    %v1116 = vpow.pop %v1115
    %v1117 = vmul.f32 %v1105, 1.442695
    %v1118 = vpow.pop %v1117
    %v1119 = vmul.f32 %v1106, 1.442695
    %v1120 = vpow.pop %v1119
    %v1121 = vadd.f32 %v1108, 1.0
    %v1122 = vadd.f32 %v1110, 1.0
    %v1123 = vadd.f32 %v1112, 1.0
    %v1124 = vadd.f32 %v1114, 1.0
    %v1125 = vadd.f32 %v1116, 1.0
    %v1126 = vadd.f32 %v1118, 1.0
    %v1127 = vadd.f32 %v1120, 1.0
    %v1128 = vrcp.pop %v1121
    %v1129 = vmul.f32 1.0, %v1128
    %v1130 = vrcp.pop %v1122
    %v1131 = vmul.f32 1.0, %v1130
    %v1132 = vrcp.pop %v1123
    %v1133 = vmul.f32 1.0, %v1132
    %v1134 = vrcp.pop %v1124
    %v1135 = vmul.f32 1.0, %v1134
    %v1136 = vrcp.pop %v1125
    %v1137 = vmul.f32 1.0, %v1136
    %v1138 = vrcp.pop %v1126
    %v1139 = vmul.f32 1.0, %v1138
    %v1140 = vrcp.pop %v1127
    %v1141 = vmul.f32 1.0, %v1140
    %v1149 = vcombine.low %v1129, %v1131
    %v1150 = vcombine.low %v1133, %v1135
    %v1151 = vcombine.low %v1137, %v1139
    %v1153 = vunpack.c.l.s4 1966171168
    %v1154 = vunpack.c.0.s8 %v1153
    %v1155 = vlaneseq
    %v1156 = vshrl.u32 %v1155, 7
    %v1157 = vsub.s32 %v1154, %v1156
    %v1158 = vrot.slane %v1149, %v1157
    %v1160 = vunpack.c.l.s4 1966171168
    %v1161 = vunpack.c.0.s8 %v1160
    %v1162 = vlaneseq
    %v1163 = vshrl.u32 %v1162, 7
    %v1164 = vsub.s32 %v1161, %v1163
    %v1165 = vrot.slane %v1150, %v1164
    %v1167 = vunpack.c.l.s4 1966171168
    %v1168 = vunpack.c.0.s8 %v1167
    %v1169 = vlaneseq
    %v1170 = vshrl.u32 %v1169, 7
    %v1171 = vsub.s32 %v1168, %v1170
    %v1172 = vrot.slane %v1151, %v1171
    %v1174 = vunpack.c.l.s4 1966171168
    %v1175 = vunpack.c.0.s8 %v1174
    %v1176 = vlaneseq
    %v1177 = vshrl.u32 %v1176, 7
    %v1178 = vsub.s32 %v1175, %v1177
    %v1179 = vrot.slane %v1141, %v1178
    %v1180 = vcombine.low %v1158, %v1165
    %v1181 = vcombine.low %v1172, %v1179
    %v1183 = vunpack.c.l.s4 1966171168
    %v1184 = vunpack.c.0.s8 %v1183
    %v1185 = vlaneseq
    %v1186 = vshrl.u32 %v1185, 7
    %v1187 = vsub.s32 %v1184, %v1186
    %v1188 = vrot.slane %v1180, %v1187
    %v1190 = vunpack.c.l.s4 1966171168
    %v1191 = vunpack.c.0.s8 %v1190
    %v1192 = vlaneseq
    %v1193 = vshrl.u32 %v1192, 7
    %v1194 = vsub.s32 %v1191, %v1193
    %v1195 = vrot.slane %v1181, %v1194
    %v1196 = vcombine.low %v1188, %v1195
    %v1198 = vlaneseq
    %vm1199 = vcmp.ge.s32.totalorder %v1198, 0
    %vm1200 = vcmp.lt.s32.totalorder %v1198, 896
    %vm1201 = vmand %vm1199, %vm1200
    %1202 = vst.msk [vmem:[#allocation8] sm:$0x7f] %vm1201, %v1196
    // Predicated region
    $region26: #{tpu_custom_call.1} parent=1 // pred_check
      _
    $region27: #{tpu_custom_call.1} parent=1 // pred_check_branch
      %1204 = sbr.rel (0) target = $region29
    $region28: #{tpu_custom_call.1} parent=1 // pred_region
      %s1206 = ssub.s32 112, 112
      %1207 = vsyncadd [#allocation4], %s1206
      %s1209 = sshll.u32 [#allocation8], 4
      %s1210 = int_to_ptr.vmem [resolvable:$true] %s1209
      %1212 = dma.vmem_to_hbm [thread:$0]  %s1210, 112, %s3, [#allocation4]
    $region29: #{tpu_custom_call.1} parent=1 // pred_fallthru
      _
    // Predicated region
    $region30: #{tpu_custom_call.1} parent=1 // pred_check
      _
    $region31: #{tpu_custom_call.1} parent=1 // pred_check_branch
      %1214 = sbr.rel (0) target = $region33
    $region32: #{tpu_custom_call.1} parent=1 // pred_region
      %1215 = dma.done [#allocation4], 112
    $region33: #{tpu_custom_call.1} parent=1 // pred_fallthru
      _
    %1216 = vsyncpa [#allocation3], 1
    %1217 = vsyncpa [#allocation6], 1
    %1218 = vsyncpa [#allocation4], 1

</llo_original>
